<compile_context>
chip_gen: v7x
topology: tpu7x:2x2x1
jax: 0.10.0
libtpu: 0.0.40
codegen_flags: <defaults>
</compile_context>

<pallas_src>
import math

import jax
import jax.numpy as jnp
from jax import lax
from jax.experimental import pallas as pl
from jax.experimental.pallas import tpu as pltpu

INPUT_SIZE = 1
HIDDEN = 32


def rnn_kernel(x_ref, h0_ref, wih_ref, whh_ref, bias_ref, rout_ref, hout_ref):
    """Single-layer Elman RNN (tanh), PyTorch nn.RNN semantics, batch-first I/O.

    x_ref:    (TB, T, I)   batch-first input block
    h0_ref:   (TB, H)      initial hidden state block
    wih_ref:  (I, H)       W_ih^T  (I == 1)
    whh_ref:  (H, H)       W_hh^T
    bias_ref: (1, H)       b_ih + b_hh (fused)
    rout_ref: (TB, T, H)   all hidden states, batch-first
    hout_ref: (TB, H)      final hidden state
    """
    T = x_ref.shape[1]

    # Hoist the input projection + fused bias off the serial per-timestep chain.
    # INPUT_SIZE == 1, so x @ W_ih^T is just a lane-broadcast multiply (no MXU).
    pre_in = x_ref[...] * wih_ref[...] + bias_ref[...]   # (TB,T,1)*(1,H)+(1,H) -> (TB,T,H)
    whh = whh_ref[...]                                   # load once; lives in vregs

    # Serial recurrence over T.  T is a small static constant, so a fully
    # unrolled loop with static indices keeps h vreg-resident (no VMEM
    # round-trip per step) and leaves one matmul + tanh on the critical path.
    h = h0_ref[...]                                      # (TB, H)
    for t in range(T):
        h = jnp.tanh(pre_in[:, t, :]
                     + jnp.dot(h, whh, preferred_element_type=jnp.float32))
        rout_ref[:, t, :] = h                            # static-index store
    hout_ref[...] = h                                    # final state, written once


def rnn_forward(x, h_state, params):
    """x: (B, T, I) float32 (batch_first), h_state: (1, B, H) float32.

    Returns (r_out, h_state_out) with PyTorch shapes: (B, T, H) and (1, B, H).
    """
    B, T, I = x.shape
    H = HIDDEN
    w_ih, w_hh, b_ih, b_hh = params                      # (H, I), (H, H), (H,), (H,)

    x = x.astype(jnp.float32)
    h0 = h_state[0].astype(jnp.float32)                  # (B, H)
    wih_t = jnp.transpose(w_ih).astype(jnp.float32)      # (I, H)
    whh_t = jnp.transpose(w_hh).astype(jnp.float32)      # (H, H)
    bias = (b_ih + b_hh).reshape(1, H).astype(jnp.float32)   # fused bias

    # Grid over batch blocks: the recurrence is serial in T but embarrassingly
    # parallel in B.  "parallel" lets larger batches shard across TensorCores
    # (v7x) and streams x / r_out per block instead of whole-array-in-VMEM.
    # At B=2 this is a single grid step.  (If T ever grows large, additionally
    # stream r_out over a T grid axis / raise vmem_limit_bytes.)
    TB = B if (B <= 8 or B % 8) else 8
    nb = B // TB

    r_out, h_final = pl.pallas_call(
        rnn_kernel,
        out_shape=(jax.ShapeDtypeStruct((B, T, H), jnp.float32),
                   jax.ShapeDtypeStruct((B, H), jnp.float32)),
        grid=(nb,),
        in_specs=[
            pl.BlockSpec((TB, T, I), lambda b: (b, 0, 0)),   # x
            pl.BlockSpec((TB, H), lambda b: (b, 0)),         # h0
            pl.BlockSpec((I, H), lambda b: (0, 0)),          # W_ih^T
            pl.BlockSpec((H, H), lambda b: (0, 0)),          # W_hh^T
            pl.BlockSpec((1, H), lambda b: (0, 0)),          # fused bias
        ],
        out_specs=(
            pl.BlockSpec((TB, T, H), lambda b: (b, 0, 0)),   # r_out (batch-first)
            pl.BlockSpec((TB, H), lambda b: (b, 0)),         # final hidden state
        ),
        compiler_params=pltpu.CompilerParams(
            dimension_semantics=("parallel",)),
    )(x, h0, wih_t, whh_t, bias)

    return r_out, h_final[None, :, :]                    # (B,T,H), (1,B,H)


def rnn_reference(x, h_state, params):
    """Pure-JAX reference of PyTorch nn.RNN (tanh, batch_first)."""
    w_ih, w_hh, b_ih, b_hh = params

    def step(h, x_t):
        h_new = jnp.tanh(x_t @ w_ih.T + b_ih + h @ w_hh.T + b_hh)
        return h_new, h_new

    h_final, ys = lax.scan(step, h_state[0], jnp.transpose(x, (1, 0, 2)))
    return jnp.transpose(ys, (1, 0, 2)), h_final[None, :, :]


def init_params(key):
    """Deterministic init matching PyTorch nn.RNN / nn.Linear default uniform(-k, k)."""
    H, I = HIDDEN, INPUT_SIZE
    k_rnn = 1.0 / math.sqrt(H)
    k_lin = 1.0 / math.sqrt(H)
    keys = jax.random.split(key, 6)
    w_ih = jax.random.uniform(keys[0], (H, I), jnp.float32, -k_rnn, k_rnn)
    w_hh = jax.random.uniform(keys[1], (H, H), jnp.float32, -k_rnn, k_rnn)
    b_ih = jax.random.uniform(keys[2], (H,), jnp.float32, -k_rnn, k_rnn)
    b_hh = jax.random.uniform(keys[3], (H,), jnp.float32, -k_rnn, k_rnn)
    # self.out = nn.Linear(32, 1): initialized for parity with __init__, unused in forward.
    w_out = jax.random.uniform(keys[4], (1, H), jnp.float32, -k_lin, k_lin)
    b_out = jax.random.uniform(keys[5], (1,), jnp.float32, -k_lin, k_lin)
    rnn_params = (w_ih, w_hh, b_ih, b_hh)
    lin_params = (w_out, b_out)  # TODO(synk): `self.out` is never applied in the reference forward.
    return rnn_params, lin_params


if __name__ == "__main__":
    B, T = 2, 8
    key = jax.random.PRNGKey(0)
    k_param, k_x = jax.random.split(key)

    rnn_params, _lin_params = init_params(k_param)

    x = jax.random.normal(k_x, (B, T, INPUT_SIZE), jnp.float32)   # (B, T, I) batch_first
    h_state = jnp.zeros((1, B, HIDDEN), jnp.float32)              # (num_layers, B, H)

    r_out, h_state_out = jax.jit(rnn_forward)(x, h_state, rnn_params)
    jax.block_until_ready((r_out, h_state_out))

    assert r_out.shape == (B, T, HIDDEN)
    assert h_state_out.shape == (1, B, HIDDEN)

    # Numerical check against a pure-JAX reference of nn.RNN semantics.
    r_ref, h_ref = rnn_reference(x, h_state, rnn_params)
    assert jnp.allclose(r_out, r_ref, atol=1e-5, rtol=1e-5)
    assert jnp.allclose(h_state_out, h_ref, atol=1e-5, rtol=1e-5)

    print("KERNEL_OK")
</pallas_src>

<mosaic_0001>
module attributes {stable_mosaic.version = 11 : i64} {
  func.func @rnn_kernel(%arg0: i32, %arg1: memref<2x8x1xf32, #tpu.memory_space<vmem>>, %arg2: memref<2x32xf32, #tpu.memory_space<vmem>>, %arg3: memref<1x32xf32, #tpu.memory_space<vmem>>, %arg4: memref<32x32xf32, #tpu.memory_space<vmem>>, %arg5: memref<1x32xf32, #tpu.memory_space<vmem>>, %arg6: memref<2x8x32xf32, #tpu.memory_space<vmem>>, %arg7: memref<2x32xf32, #tpu.memory_space<vmem>>) attributes {dimension_semantics = [#tpu.dimension_semantics<parallel>], iteration_bounds = array<i64: 1>, scalar_prefetch = 0 : i64, scratch_operands = 0 : i64, tpu.core_type = #tpu.core_type<tc>, window_params = [{transform_indices = @transform_0, window_bounds = array<i64: 2, 8, 1>}, {transform_indices = @transform_1, window_bounds = array<i64: 2, 32>}, {pipeline_mode = #tpu.pipeline_mode<synchronous>, transform_indices = @transform_2, window_bounds = array<i64: 1, 32>}, {pipeline_mode = #tpu.pipeline_mode<synchronous>, transform_indices = @transform_3, window_bounds = array<i64: 32, 32>}, {pipeline_mode = #tpu.pipeline_mode<synchronous>, transform_indices = @transform_4, window_bounds = array<i64: 1, 32>}, {transform_indices = @transform_5, window_bounds = array<i64: 2, 8, 32>}, {transform_indices = @transform_6, window_bounds = array<i64: 2, 32>}]} {
    %c0 = arith.constant 0 : index
    %c0_0 = arith.constant 0 : index
    %c0_1 = arith.constant 0 : index
    %0 = vector.load %arg1[%c0, %c0_0, %c0_1] : memref<2x8x1xf32, #tpu.memory_space<vmem>>, vector<2x8x1xf32>
    %c0_2 = arith.constant 0 : index
    %c0_3 = arith.constant 0 : index
    %1 = vector.load %arg3[%c0_2, %c0_3] : memref<1x32xf32, #tpu.memory_space<vmem>>, vector<1x32xf32>
    %2 = vector.shape_cast %1 : vector<1x32xf32> to vector<1x1x32xf32>
    %3 = vector.broadcast %0 : vector<2x8x1xf32> to vector<2x8x32xf32>
    %4 = vector.broadcast %2 : vector<1x1x32xf32> to vector<2x8x32xf32>
    %5 = arith.mulf %3, %4 : vector<2x8x32xf32>
    %c0_4 = arith.constant 0 : index
    %c0_5 = arith.constant 0 : index
    %6 = vector.load %arg5[%c0_4, %c0_5] : memref<1x32xf32, #tpu.memory_space<vmem>>, vector<1x32xf32>
    %7 = vector.shape_cast %6 : vector<1x32xf32> to vector<1x1x32xf32>
    %8 = vector.broadcast %7 : vector<1x1x32xf32> to vector<2x8x32xf32>
    %9 = arith.addf %5, %8 : vector<2x8x32xf32>
    %c0_6 = arith.constant 0 : index
    %c0_7 = arith.constant 0 : index
    %10 = vector.load %arg4[%c0_6, %c0_7] : memref<32x32xf32, #tpu.memory_space<vmem>>, vector<32x32xf32>
    %c0_8 = arith.constant 0 : index
    %c0_9 = arith.constant 0 : index
    %11 = vector.load %arg2[%c0_8, %c0_9] : memref<2x32xf32, #tpu.memory_space<vmem>>, vector<2x32xf32>
    %12 = vector.extract_strided_slice %9 {offsets = [0, 0, 0], sizes = [2, 1, 32], strides = [1, 1, 1]} : vector<2x8x32xf32> to vector<2x1x32xf32>
    %13 = vector.shape_cast %12 : vector<2x1x32xf32> to vector<2x32xf32>
    %cst = arith.constant dense<0.000000e+00> : vector<2x32xf32>
    %14 = tpu.matmul %11, %10, %cst {dimension_numbers = #tpu.dot_dimension_numbers<[1], [0], [0], [1], [0, 0, 1, 1], [], []>} : vector<2x32xf32>, vector<32x32xf32>, vector<2x32xf32> -> vector<2x32xf32>
    %15 = arith.addf %13, %14 : vector<2x32xf32>
    %16 = math.tanh %15 : vector<2x32xf32>
    %c0_10 = arith.constant 0 : index
    %c0_11 = arith.constant 0 : index
    %c0_12 = arith.constant 0 : index
    %17 = vector.load %arg6[%c0_10, %c0_11, %c0_12] : memref<2x8x32xf32, #tpu.memory_space<vmem>>, vector<2x1x32xf32>
    %18 = vector.shape_cast %17 : vector<2x1x32xf32> to vector<2x32xf32>
    %19 = vector.shape_cast %16 : vector<2x32xf32> to vector<2x1x32xf32>
    tpu.vector_store %arg6[%c0_10, %c0_11, %c0_12], %19 {strides = array<i32>} : memref<2x8x32xf32, #tpu.memory_space<vmem>>, vector<2x1x32xf32>,
    %20 = vector.extract_strided_slice %9 {offsets = [0, 1, 0], sizes = [2, 1, 32], strides = [1, 1, 1]} : vector<2x8x32xf32> to vector<2x1x32xf32>
    %21 = vector.shape_cast %20 : vector<2x1x32xf32> to vector<2x32xf32>
    %cst_13 = arith.constant dense<0.000000e+00> : vector<2x32xf32>
    %22 = tpu.matmul %16, %10, %cst_13 {dimension_numbers = #tpu.dot_dimension_numbers<[1], [0], [0], [1], [0, 0, 1, 1], [], []>} : vector<2x32xf32>, vector<32x32xf32>, vector<2x32xf32> -> vector<2x32xf32>
    %23 = arith.addf %21, %22 : vector<2x32xf32>
    %24 = math.tanh %23 : vector<2x32xf32>
    %c0_14 = arith.constant 0 : index
    %c1 = arith.constant 1 : index
    %c0_15 = arith.constant 0 : index
    %25 = vector.load %arg6[%c0_14, %c1, %c0_15] : memref<2x8x32xf32, #tpu.memory_space<vmem>>, vector<2x1x32xf32>
    %26 = vector.shape_cast %25 : vector<2x1x32xf32> to vector<2x32xf32>
    %27 = vector.shape_cast %24 : vector<2x32xf32> to vector<2x1x32xf32>
    tpu.vector_store %arg6[%c0_14, %c1, %c0_15], %27 {strides = array<i32>} : memref<2x8x32xf32, #tpu.memory_space<vmem>>, vector<2x1x32xf32>,
    %28 = vector.extract_strided_slice %9 {offsets = [0, 2, 0], sizes = [2, 1, 32], strides = [1, 1, 1]} : vector<2x8x32xf32> to vector<2x1x32xf32>
    %29 = vector.shape_cast %28 : vector<2x1x32xf32> to vector<2x32xf32>
    %cst_16 = arith.constant dense<0.000000e+00> : vector<2x32xf32>
    %30 = tpu.matmul %24, %10, %cst_16 {dimension_numbers = #tpu.dot_dimension_numbers<[1], [0], [0], [1], [0, 0, 1, 1], [], []>} : vector<2x32xf32>, vector<32x32xf32>, vector<2x32xf32> -> vector<2x32xf32>
    %31 = arith.addf %29, %30 : vector<2x32xf32>
    %32 = math.tanh %31 : vector<2x32xf32>
    %c0_17 = arith.constant 0 : index
    %c2 = arith.constant 2 : index
    %c0_18 = arith.constant 0 : index
    %33 = vector.load %arg6[%c0_17, %c2, %c0_18] : memref<2x8x32xf32, #tpu.memory_space<vmem>>, vector<2x1x32xf32>
    %34 = vector.shape_cast %33 : vector<2x1x32xf32> to vector<2x32xf32>
    %35 = vector.shape_cast %32 : vector<2x32xf32> to vector<2x1x32xf32>
    tpu.vector_store %arg6[%c0_17, %c2, %c0_18], %35 {strides = array<i32>} : memref<2x8x32xf32, #tpu.memory_space<vmem>>, vector<2x1x32xf32>,
    %36 = vector.extract_strided_slice %9 {offsets = [0, 3, 0], sizes = [2, 1, 32], strides = [1, 1, 1]} : vector<2x8x32xf32> to vector<2x1x32xf32>
    %37 = vector.shape_cast %36 : vector<2x1x32xf32> to vector<2x32xf32>
    %cst_19 = arith.constant dense<0.000000e+00> : vector<2x32xf32>
    %38 = tpu.matmul %32, %10, %cst_19 {dimension_numbers = #tpu.dot_dimension_numbers<[1], [0], [0], [1], [0, 0, 1, 1], [], []>} : vector<2x32xf32>, vector<32x32xf32>, vector<2x32xf32> -> vector<2x32xf32>
    %39 = arith.addf %37, %38 : vector<2x32xf32>
    %40 = math.tanh %39 : vector<2x32xf32>
    %c0_20 = arith.constant 0 : index
    %c3 = arith.constant 3 : index
    %c0_21 = arith.constant 0 : index
    %41 = vector.load %arg6[%c0_20, %c3, %c0_21] : memref<2x8x32xf32, #tpu.memory_space<vmem>>, vector<2x1x32xf32>
    %42 = vector.shape_cast %41 : vector<2x1x32xf32> to vector<2x32xf32>
    %43 = vector.shape_cast %40 : vector<2x32xf32> to vector<2x1x32xf32>
    tpu.vector_store %arg6[%c0_20, %c3, %c0_21], %43 {strides = array<i32>} : memref<2x8x32xf32, #tpu.memory_space<vmem>>, vector<2x1x32xf32>,
    %44 = vector.extract_strided_slice %9 {offsets = [0, 4, 0], sizes = [2, 1, 32], strides = [1, 1, 1]} : vector<2x8x32xf32> to vector<2x1x32xf32>
    %45 = vector.shape_cast %44 : vector<2x1x32xf32> to vector<2x32xf32>
    %cst_22 = arith.constant dense<0.000000e+00> : vector<2x32xf32>
    %46 = tpu.matmul %40, %10, %cst_22 {dimension_numbers = #tpu.dot_dimension_numbers<[1], [0], [0], [1], [0, 0, 1, 1], [], []>} : vector<2x32xf32>, vector<32x32xf32>, vector<2x32xf32> -> vector<2x32xf32>
    %47 = arith.addf %45, %46 : vector<2x32xf32>
    %48 = math.tanh %47 : vector<2x32xf32>
    %c0_23 = arith.constant 0 : index
    %c4 = arith.constant 4 : index
    %c0_24 = arith.constant 0 : index
    %49 = vector.load %arg6[%c0_23, %c4, %c0_24] : memref<2x8x32xf32, #tpu.memory_space<vmem>>, vector<2x1x32xf32>
    %50 = vector.shape_cast %49 : vector<2x1x32xf32> to vector<2x32xf32>
    %51 = vector.shape_cast %48 : vector<2x32xf32> to vector<2x1x32xf32>
    tpu.vector_store %arg6[%c0_23, %c4, %c0_24], %51 {strides = array<i32>} : memref<2x8x32xf32, #tpu.memory_space<vmem>>, vector<2x1x32xf32>,
    %52 = vector.extract_strided_slice %9 {offsets = [0, 5, 0], sizes = [2, 1, 32], strides = [1, 1, 1]} : vector<2x8x32xf32> to vector<2x1x32xf32>
    %53 = vector.shape_cast %52 : vector<2x1x32xf32> to vector<2x32xf32>
    %cst_25 = arith.constant dense<0.000000e+00> : vector<2x32xf32>
    %54 = tpu.matmul %48, %10, %cst_25 {dimension_numbers = #tpu.dot_dimension_numbers<[1], [0], [0], [1], [0, 0, 1, 1], [], []>} : vector<2x32xf32>, vector<32x32xf32>, vector<2x32xf32> -> vector<2x32xf32>
    %55 = arith.addf %53, %54 : vector<2x32xf32>
    %56 = math.tanh %55 : vector<2x32xf32>
    %c0_26 = arith.constant 0 : index
    %c5 = arith.constant 5 : index
    %c0_27 = arith.constant 0 : index
    %57 = vector.load %arg6[%c0_26, %c5, %c0_27] : memref<2x8x32xf32, #tpu.memory_space<vmem>>, vector<2x1x32xf32>
    %58 = vector.shape_cast %57 : vector<2x1x32xf32> to vector<2x32xf32>
    %59 = vector.shape_cast %56 : vector<2x32xf32> to vector<2x1x32xf32>
    tpu.vector_store %arg6[%c0_26, %c5, %c0_27], %59 {strides = array<i32>} : memref<2x8x32xf32, #tpu.memory_space<vmem>>, vector<2x1x32xf32>,
    %60 = vector.extract_strided_slice %9 {offsets = [0, 6, 0], sizes = [2, 1, 32], strides = [1, 1, 1]} : vector<2x8x32xf32> to vector<2x1x32xf32>
    %61 = vector.shape_cast %60 : vector<2x1x32xf32> to vector<2x32xf32>
    %cst_28 = arith.constant dense<0.000000e+00> : vector<2x32xf32>
    %62 = tpu.matmul %56, %10, %cst_28 {dimension_numbers = #tpu.dot_dimension_numbers<[1], [0], [0], [1], [0, 0, 1, 1], [], []>} : vector<2x32xf32>, vector<32x32xf32>, vector<2x32xf32> -> vector<2x32xf32>
    %63 = arith.addf %61, %62 : vector<2x32xf32>
    %64 = math.tanh %63 : vector<2x32xf32>
    %c0_29 = arith.constant 0 : index
    %c6 = arith.constant 6 : index
    %c0_30 = arith.constant 0 : index
    %65 = vector.load %arg6[%c0_29, %c6, %c0_30] : memref<2x8x32xf32, #tpu.memory_space<vmem>>, vector<2x1x32xf32>
    %66 = vector.shape_cast %65 : vector<2x1x32xf32> to vector<2x32xf32>
    %67 = vector.shape_cast %64 : vector<2x32xf32> to vector<2x1x32xf32>
    tpu.vector_store %arg6[%c0_29, %c6, %c0_30], %67 {strides = array<i32>} : memref<2x8x32xf32, #tpu.memory_space<vmem>>, vector<2x1x32xf32>,
    %68 = vector.extract_strided_slice %9 {offsets = [0, 7, 0], sizes = [2, 1, 32], strides = [1, 1, 1]} : vector<2x8x32xf32> to vector<2x1x32xf32>
    %69 = vector.shape_cast %68 : vector<2x1x32xf32> to vector<2x32xf32>
    %cst_31 = arith.constant dense<0.000000e+00> : vector<2x32xf32>
    %70 = tpu.matmul %64, %10, %cst_31 {dimension_numbers = #tpu.dot_dimension_numbers<[1], [0], [0], [1], [0, 0, 1, 1], [], []>} : vector<2x32xf32>, vector<32x32xf32>, vector<2x32xf32> -> vector<2x32xf32>
    %71 = arith.addf %69, %70 : vector<2x32xf32>
    %72 = math.tanh %71 : vector<2x32xf32>
    %c0_32 = arith.constant 0 : index
    %c7 = arith.constant 7 : index
    %c0_33 = arith.constant 0 : index
    %73 = vector.load %arg6[%c0_32, %c7, %c0_33] : memref<2x8x32xf32, #tpu.memory_space<vmem>>, vector<2x1x32xf32>
    %74 = vector.shape_cast %73 : vector<2x1x32xf32> to vector<2x32xf32>
    %75 = vector.shape_cast %72 : vector<2x32xf32> to vector<2x1x32xf32>
    tpu.vector_store %arg6[%c0_32, %c7, %c0_33], %75 {strides = array<i32>} : memref<2x8x32xf32, #tpu.memory_space<vmem>>, vector<2x1x32xf32>,
    %c0_34 = arith.constant 0 : index
    %c0_35 = arith.constant 0 : index
    %76 = vector.load %arg7[%c0_34, %c0_35] : memref<2x32xf32, #tpu.memory_space<vmem>>, vector<2x32xf32>
    tpu.vector_store %arg7[%c0_34, %c0_35], %72 {strides = array<i32>} : memref<2x32xf32, #tpu.memory_space<vmem>>, vector<2x32xf32>,
    return
  }
  func.func @transform_0(%arg0: i32) -> (i32, i32, i32) {
    %c0_i32 = arith.constant 0 : i32
    %c0_i32_0 = arith.constant 0 : i32
    %c0_i32_1 = arith.constant 0 : i32
    return %arg0, %c0_i32, %c0_i32_0 : i32, i32, i32
  }
  func.func @transform_1(%arg0: i32) -> (i32, i32) {
    %c0_i32 = arith.constant 0 : i32
    %c0_i32_0 = arith.constant 0 : i32
    return %arg0, %c0_i32 : i32, i32
  }
  func.func @transform_2(%arg0: i32) -> (i32, i32) {
    %c0_i32 = arith.constant 0 : i32
    %c0_i32_0 = arith.constant 0 : i32
    %c0_i32_1 = arith.constant 0 : i32
    return %c0_i32, %c0_i32_0 : i32, i32
  }
  func.func @transform_3(%arg0: i32) -> (i32, i32) {
    %c0_i32 = arith.constant 0 : i32
    %c0_i32_0 = arith.constant 0 : i32
    %c0_i32_1 = arith.constant 0 : i32
    return %c0_i32, %c0_i32_0 : i32, i32
  }
  func.func @transform_4(%arg0: i32) -> (i32, i32) {
    %c0_i32 = arith.constant 0 : i32
    %c0_i32_0 = arith.constant 0 : i32
    %c0_i32_1 = arith.constant 0 : i32
    return %c0_i32, %c0_i32_0 : i32, i32
  }
  func.func @transform_5(%arg0: i32) -> (i32, i32, i32) {
    %c0_i32 = arith.constant 0 : i32
    %c0_i32_0 = arith.constant 0 : i32
    %c0_i32_1 = arith.constant 0 : i32
    return %arg0, %c0_i32, %c0_i32_0 : i32, i32, i32
  }
  func.func @transform_6(%arg0: i32) -> (i32, i32) {
    %c0_i32 = arith.constant 0 : i32
    %c0_i32_0 = arith.constant 0 : i32
    return %arg0, %c0_i32 : i32, i32
  }
}

</mosaic_0001>

<llo_original>
// kernel: rnn_forward.1
$region0: #{rnn_forward.1}
  #allocation0 [shape = 'u32[]', space=smem, size = 0x4, offset = 0x4, fixed_abs, tag = 'smem constant byte address 0x4 - core index']
  #allocation1 [shape = 'u32[144,128]{1,0:T(1,128)}', space=vmem, size = 0x12000, scoped, tag = 'internal scratch']
  %s0 = inlined_call_operand.vmem [shape: f32[2,8,1], index: 0, kind: input, shape index: {}]
  %s1 = inlined_call_operand.vmem [shape: f32[2,32], index: 1, kind: input, shape index: {}]
  %s2 = inlined_call_operand.vmem [shape: f32[1,32], index: 2, kind: input, shape index: {}]
  %s3 = inlined_call_operand.vmem [shape: f32[32,32], index: 3, kind: input, shape index: {}]
  %s4 = inlined_call_operand.vmem [shape: f32[1,32], index: 4, kind: input, shape index: {}]
  %s5 = inlined_call_operand.hbm [shape: f32[2,8,32], index: 5, kind: output, shape index: {0}]
  %s6 = inlined_call_operand.hbm [shape: f32[2,32], index: 6, kind: output, shape index: {1}]
  %7 = xla_tuple %s5, %s6
  %s8 = sld [smem:[#allocation0]]
  $region38: #{rnn_forward.1} parent=0
    _
  %s10 = ssub.s32 1, %s8
  %s11 = scalar_select 0, %s10, %s8
  $region1: #{rnn_forward.1} parent=0
    #allocation2 [shape = 'u8[8192]{0}', space=vmem, size = 0x2000, scoped, tag = 'output window, operand 0, single buffered']
    #allocation3 [shape = 's32[1]{0}', space=sflag, size = 0x4, scoped, tag = 'scoped memory for rnn_forward.1']
    #allocation4 [shape = 'u8[1024]{0}', space=vmem, size = 0x400, scoped, tag = 'output window, operand 1, single buffered']
    #allocation5 [shape = 's32[1]{0}', space=sflag, size = 0x4, scoped, tag = 'scoped memory for rnn_forward.1']
    %12 = vsyncpa [#allocation3], 0
    %13 = vsyncpa [#allocation5], 0
    // Predicated region
    $region2: #{rnn_forward.1} parent=1 // pred_check
      _
    $region3: #{rnn_forward.1} parent=1 // pred_check_branch
      %15 = sbr.rel (0) target = $region5
    $region4: #{rnn_forward.1} parent=1 // pred_region
      _
    $region5: #{rnn_forward.1} parent=1 // pred_fallthru
      _
    // Predicated region
    $region6: #{rnn_forward.1} parent=1 // pred_check
      _
    $region7: #{rnn_forward.1} parent=1 // pred_check_branch
      %17 = sbr.rel (0) target = $region9
    $region8: #{rnn_forward.1} parent=1 // pred_region
      _
    $region9: #{rnn_forward.1} parent=1 // pred_fallthru
      _
    // Predicated region
    $region10: #{rnn_forward.1} parent=1 // pred_check
      _
    $region11: #{rnn_forward.1} parent=1 // pred_check_branch
      %19 = sbr.rel (0) target = $region13
    $region12: #{rnn_forward.1} parent=1 // pred_region
      _
    $region13: #{rnn_forward.1} parent=1 // pred_fallthru
      _
    // Predicated region
    $region14: #{rnn_forward.1} parent=1 // pred_check
      _
    $region15: #{rnn_forward.1} parent=1 // pred_check_branch
      %21 = sbr.rel (0) target = $region17
    $region16: #{rnn_forward.1} parent=1 // pred_region
      _
    $region17: #{rnn_forward.1} parent=1 // pred_fallthru
      _
    // Predicated region
    $region18: #{rnn_forward.1} parent=1 // pred_check
      _
    $region19: #{rnn_forward.1} parent=1 // pred_check_branch
      %23 = sbr.rel (0) target = $region21
    $region20: #{rnn_forward.1} parent=1 // pred_region
      _
    $region21: #{rnn_forward.1} parent=1 // pred_fallthru
      _
    %v24 = vld [vmem:[%s0] sm:$0xff]
    %v25 = vld [vmem:[%s0 + $0x8] sm:$0xff]
    %v26 = vld [vmem:[%s2] sm:$0x1]
    %28 = vset.pattern.permute.xlu0 0
    %29 = vperm.xlu0 %28, %v24
    %v30 = vpop.permute.xlu0 %29
    %33 = vset.pattern.permute.xlu0 0
    %34 = vperm.xlu0 %33, %v25
    %v35 = vpop.permute.xlu0 %34
    %v38 = vlaneseq
    %v39 = vshrl.u32 %v38, 7
    %v40 = vsub.s32 0, %v39
    %v41 = vrot.slane %v26, %v40
    %v43 = vmul.f32 %v30, %v41
    %v44 = vmul.f32 %v35, %v41
    %v45 = vld [vmem:[%s4] sm:$0x1]
    %v47 = vlaneseq
    %v48 = vshrl.u32 %v47, 7
    %v49 = vsub.s32 0, %v48
    %v50 = vrot.slane %v45, %v49
    %v52 = vadd.f32 %v43, %v50
    %v53 = vadd.f32 %v44, %v50
    %v54 = vld [vmem:[%s3] sm:$0xff]
    %v55 = vld [vmem:[%s3 + $0x8] sm:$0xff]
    %v56 = vld [vmem:[%s3 + $0x10] sm:$0xff]
    %v57 = vld [vmem:[%s3 + $0x18] sm:$0xff]
    %v58 = vld [vmem:[%s1] sm:$0x3]
    %vm59 = vcmask 261120
    %v61 = vsel %vm59, %v58, 0
    %63 = vmatprep.subr.mxu0 0.0
    %64 = vmatpush1.msra.mxu0 %v54
    %65 = vmatprep.subr.mxu0 0.0
    %66 = vmatpush1.msra.mxu0 %v55
    %67 = vmatprep.subr.mxu0 0.0
    %68 = vmatpush1.msra.mxu0 %v56
    %69 = vmatprep.subr.mxu0 0.0
    %70 = vmatpush1.msra.mxu0 %v57
    %71 = vmatprep.subr.mxu0 0.0
    %72 = vmatpush1.msra.mxu0 0.0
    %73 = vmatprep.subr.mxu0 0.0
    %74 = vmatpush1.msra.mxu0 0.0
    %75 = vmatprep.subr.mxu0 0.0
    %76 = vmatpush1.msra.mxu0 0.0
    %77 = vmatprep.subr.mxu0 0.0
    %78 = vmatpush1.msra.mxu0 0.0
    %79 = vmatprep.subr.mxu0 0.0
    %80 = vmatpush1.msra.mxu0 0.0
    %81 = vmatprep.subr.mxu0 0.0
    %82 = vmatpush1.msra.mxu0 0.0
    %83 = vmatprep.subr.mxu0 0.0
    %84 = vmatpush1.msra.mxu0 0.0
    %85 = vmatprep.subr.mxu0 0.0
    %86 = vmatpush1.msra.mxu0 0.0
    %87 = vmatprep.subr.mxu0 0.0
    %88 = vmatpush1.msra.mxu0 0.0
    %89 = vmatprep.subr.mxu0 0.0
    %90 = vmatpush1.msra.mxu0 0.0
    %91 = vmatprep.subr.mxu0 0.0
    %92 = vmatpush1.msra.mxu0 0.0
    %93 = vmatprep.subr.mxu0 0.0
    %94 = vmatpush1.msra.mxu0 0.0
    %95 = vmatprep.subr.mxu0 0.0
    %96 = vmatpush1.msra.mxu0 0.0
    %97 = vmatprep.subr.mxu0 0.0
    %98 = vmatpush1.msra.mxu0 0.0
    %99 = vmatprep.subr.mxu0 0.0
    %100 = vmatpush1.msra.mxu0 0.0
    %101 = vmatprep.subr.mxu0 0.0
    %102 = vmatpush1.msra.mxu0 0.0
    %103 = vmatprep.subr.mxu0 0.0
    %104 = vmatpush1.msra.mxu0 0.0
    %105 = vmatprep.subr.mxu0 0.0
    %106 = vmatpush1.msra.mxu0 0.0
    %107 = vmatprep.subr.mxu0 0.0
    %108 = vmatpush1.msra.mxu0 0.0
    %109 = vmatprep.subr.mxu0 0.0
    %110 = vmatpush1.msra.mxu0 0.0
    %111 = vmatprep.subr.mxu0 0.0
    %112 = vmatpush1.msra.mxu0 0.0
    %113 = vmatprep.subr.mxu0 0.0
    %114 = vmatpush1.msra.mxu0 0.0
    %115 = vmatprep.subr.mxu0 0.0
    %116 = vmatpush1.msra.mxu0 0.0
    %117 = vmatprep.subr.mxu0 0.0
    %118 = vmatpush1.msra.mxu0 0.0
    %119 = vmatprep.subr.mxu0 0.0
    %120 = vmatpush1.msra.mxu0 0.0
    %121 = vmatprep.subr.mxu0 0.0
    %122 = vmatpush1.msra.mxu0 0.0
    %123 = vmatprep.subr.mxu0 0.0
    %124 = vmatpush1.msra.mxu0 0.0
    %125 = vmatprep.subr.mxu0 0.0
    %126 = vmatpush1.msra.mxu0 0.0
    %127 = vmatprep.mubr.f32.mxu0 0.0
    %128 = vmatmul.mubr.f32.gmra.mrb[0].mxu0 %v61
    %v129 = vpop.f32.mrb[0].mxu0
    %v130 = vadd.f32 0.0, %v129
    %v131 = vpop.f32.mrb[0].mxu0
    %132 = vdwg.mxu0
    %v134 = vrot.slane %v130, 1
    %v137 = vadd.f32 %v52, %v130
    %v138 = vadd.f32 %v53, %v134
    %v139 = vtanh.pop %v137
    %v140 = vtanh.pop %v138
    %vm141 = vcmask 253952
    %142 = vst.msk [vmem:[#allocation2] sm:$0x1] %vm141, %v139
    %143 = vst.msk [vmem:[#allocation2 + $0x8] sm:$0x1] %vm141, %v140
    %v146 = vrot.slane %v140, 7
    %vm147 = vcmask 1041409
    %v148 = vsel %vm147, %v146, %v139
    %v149 = vsel %vm59, %v148, 0
    %151 = vmatprep.subr.mxu0 0.0
    %152 = vmatpush1.msra.mxu0 %v54
    %153 = vmatprep.subr.mxu0 0.0
    %154 = vmatpush1.msra.mxu0 %v55
    %155 = vmatprep.subr.mxu0 0.0
    %156 = vmatpush1.msra.mxu0 %v56
    %157 = vmatprep.subr.mxu0 0.0
    %158 = vmatpush1.msra.mxu0 %v57
    %159 = vmatprep.subr.mxu0 0.0
    %160 = vmatpush1.msra.mxu0 0.0
    %161 = vmatprep.subr.mxu0 0.0
    %162 = vmatpush1.msra.mxu0 0.0
    %163 = vmatprep.subr.mxu0 0.0
    %164 = vmatpush1.msra.mxu0 0.0
    %165 = vmatprep.subr.mxu0 0.0
    %166 = vmatpush1.msra.mxu0 0.0
    %167 = vmatprep.subr.mxu0 0.0
    %168 = vmatpush1.msra.mxu0 0.0
    %169 = vmatprep.subr.mxu0 0.0
    %170 = vmatpush1.msra.mxu0 0.0
    %171 = vmatprep.subr.mxu0 0.0
    %172 = vmatpush1.msra.mxu0 0.0
    %173 = vmatprep.subr.mxu0 0.0
    %174 = vmatpush1.msra.mxu0 0.0
    %175 = vmatprep.subr.mxu0 0.0
    %176 = vmatpush1.msra.mxu0 0.0
    %177 = vmatprep.subr.mxu0 0.0
    %178 = vmatpush1.msra.mxu0 0.0
    %179 = vmatprep.subr.mxu0 0.0
    %180 = vmatpush1.msra.mxu0 0.0
    %181 = vmatprep.subr.mxu0 0.0
    %182 = vmatpush1.msra.mxu0 0.0
    %183 = vmatprep.subr.mxu0 0.0
    %184 = vmatpush1.msra.mxu0 0.0
    %185 = vmatprep.subr.mxu0 0.0
    %186 = vmatpush1.msra.mxu0 0.0
    %187 = vmatprep.subr.mxu0 0.0
    %188 = vmatpush1.msra.mxu0 0.0
    %189 = vmatprep.subr.mxu0 0.0
    %190 = vmatpush1.msra.mxu0 0.0
    %191 = vmatprep.subr.mxu0 0.0
    %192 = vmatpush1.msra.mxu0 0.0
    %193 = vmatprep.subr.mxu0 0.0
    %194 = vmatpush1.msra.mxu0 0.0
    %195 = vmatprep.subr.mxu0 0.0
    %196 = vmatpush1.msra.mxu0 0.0
    %197 = vmatprep.subr.mxu0 0.0
    %198 = vmatpush1.msra.mxu0 0.0
    %199 = vmatprep.subr.mxu0 0.0
    %200 = vmatpush1.msra.mxu0 0.0
    %201 = vmatprep.subr.mxu0 0.0
    %202 = vmatpush1.msra.mxu0 0.0
    %203 = vmatprep.subr.mxu0 0.0
    %204 = vmatpush1.msra.mxu0 0.0
    %205 = vmatprep.subr.mxu0 0.0
    %206 = vmatpush1.msra.mxu0 0.0
    %207 = vmatprep.subr.mxu0 0.0
    %208 = vmatpush1.msra.mxu0 0.0
    %209 = vmatprep.subr.mxu0 0.0
    %210 = vmatpush1.msra.mxu0 0.0
    %211 = vmatprep.subr.mxu0 0.0
    %212 = vmatpush1.msra.mxu0 0.0
    %213 = vmatprep.subr.mxu0 0.0
    %214 = vmatpush1.msra.mxu0 0.0
    %215 = vmatprep.mubr.f32.mxu0 0.0
    %216 = vmatmul.mubr.f32.gmra.mrb[0].mxu0 %v149
    %v217 = vpop.f32.mrb[0].mxu0
    %v218 = vadd.f32 0.0, %v217
    %v219 = vpop.f32.mrb[0].mxu0
    %220 = vdwg.mxu0
    %v222 = vrot.slane %v218, 7
    %v225 = vadd.f32 %v52, %v222
    %v226 = vadd.f32 %v53, %v218
    %v227 = vtanh.pop %v225
    %v228 = vtanh.pop %v226
    %vm229 = vcmask 254977
    %230 = vst.msk [vmem:[#allocation2] sm:$0x2] %vm229, %v227
    %231 = vst.msk [vmem:[#allocation2 + $0x8] sm:$0x2] %vm229, %v228
    %v234 = vrot.slane %v227, 1
    %v235 = vsel %vm147, %v228, %v234
    %v236 = vsel %vm59, %v235, 0
    %238 = vmatprep.subr.mxu0 0.0
    %239 = vmatpush1.msra.mxu0 %v54
    %240 = vmatprep.subr.mxu0 0.0
    %241 = vmatpush1.msra.mxu0 %v55
    %242 = vmatprep.subr.mxu0 0.0
    %243 = vmatpush1.msra.mxu0 %v56
    %244 = vmatprep.subr.mxu0 0.0
    %245 = vmatpush1.msra.mxu0 %v57
    %246 = vmatprep.subr.mxu0 0.0
    %247 = vmatpush1.msra.mxu0 0.0
    %248 = vmatprep.subr.mxu0 0.0
    %249 = vmatpush1.msra.mxu0 0.0
    %250 = vmatprep.subr.mxu0 0.0
    %251 = vmatpush1.msra.mxu0 0.0
    %252 = vmatprep.subr.mxu0 0.0
    %253 = vmatpush1.msra.mxu0 0.0
    %254 = vmatprep.subr.mxu0 0.0
    %255 = vmatpush1.msra.mxu0 0.0
    %256 = vmatprep.subr.mxu0 0.0
    %257 = vmatpush1.msra.mxu0 0.0
    %258 = vmatprep.subr.mxu0 0.0
    %259 = vmatpush1.msra.mxu0 0.0
    %260 = vmatprep.subr.mxu0 0.0
    %261 = vmatpush1.msra.mxu0 0.0
    %262 = vmatprep.subr.mxu0 0.0
    %263 = vmatpush1.msra.mxu0 0.0
    %264 = vmatprep.subr.mxu0 0.0
    %265 = vmatpush1.msra.mxu0 0.0
    %266 = vmatprep.subr.mxu0 0.0
    %267 = vmatpush1.msra.mxu0 0.0
    %268 = vmatprep.subr.mxu0 0.0
    %269 = vmatpush1.msra.mxu0 0.0
    %270 = vmatprep.subr.mxu0 0.0
    %271 = vmatpush1.msra.mxu0 0.0
    %272 = vmatprep.subr.mxu0 0.0
    %273 = vmatpush1.msra.mxu0 0.0
    %274 = vmatprep.subr.mxu0 0.0
    %275 = vmatpush1.msra.mxu0 0.0
    %276 = vmatprep.subr.mxu0 0.0
    %277 = vmatpush1.msra.mxu0 0.0
    %278 = vmatprep.subr.mxu0 0.0
    %279 = vmatpush1.msra.mxu0 0.0
    %280 = vmatprep.subr.mxu0 0.0
    %281 = vmatpush1.msra.mxu0 0.0
    %282 = vmatprep.subr.mxu0 0.0
    %283 = vmatpush1.msra.mxu0 0.0
    %284 = vmatprep.subr.mxu0 0.0
    %285 = vmatpush1.msra.mxu0 0.0
    %286 = vmatprep.subr.mxu0 0.0
    %287 = vmatpush1.msra.mxu0 0.0
    %288 = vmatprep.subr.mxu0 0.0
    %289 = vmatpush1.msra.mxu0 0.0
    %290 = vmatprep.subr.mxu0 0.0
    %291 = vmatpush1.msra.mxu0 0.0
    %292 = vmatprep.subr.mxu0 0.0
    %293 = vmatpush1.msra.mxu0 0.0
    %294 = vmatprep.subr.mxu0 0.0
    %295 = vmatpush1.msra.mxu0 0.0
    %296 = vmatprep.subr.mxu0 0.0
    %297 = vmatpush1.msra.mxu0 0.0
    %298 = vmatprep.subr.mxu0 0.0
    %299 = vmatpush1.msra.mxu0 0.0
    %300 = vmatprep.subr.mxu0 0.0
    %301 = vmatpush1.msra.mxu0 0.0
    %302 = vmatprep.mubr.f32.mxu0 0.0
    %303 = vmatmul.mubr.f32.gmra.mrb[0].mxu0 %v236
    %v304 = vpop.f32.mrb[0].mxu0
    %v305 = vadd.f32 0.0, %v304
    %v306 = vpop.f32.mrb[0].mxu0
    %307 = vdwg.mxu0
    %v309 = vrot.slane %v305, 6
    %v310 = vrot.slane %v305, 7
    %v313 = vadd.f32 %v52, %v309
    %v314 = vadd.f32 %v53, %v310
    %v315 = vtanh.pop %v313
    %v316 = vtanh.pop %v314
    %vm317 = vcmask 256002
    %318 = vst.msk [vmem:[#allocation2] sm:$0x4] %vm317, %v315
    %319 = vst.msk [vmem:[#allocation2 + $0x8] sm:$0x4] %vm317, %v316
    %v322 = vrot.slane %v315, 2
    %v323 = vrot.slane %v316, 1
    %v324 = vsel %vm147, %v323, %v322
    %v325 = vsel %vm59, %v324, 0
    %327 = vmatprep.subr.mxu0 0.0
    %328 = vmatpush1.msra.mxu0 %v54
    %329 = vmatprep.subr.mxu0 0.0
    %330 = vmatpush1.msra.mxu0 %v55
    %331 = vmatprep.subr.mxu0 0.0
    %332 = vmatpush1.msra.mxu0 %v56
    %333 = vmatprep.subr.mxu0 0.0
    %334 = vmatpush1.msra.mxu0 %v57
    %335 = vmatprep.subr.mxu0 0.0
    %336 = vmatpush1.msra.mxu0 0.0
    %337 = vmatprep.subr.mxu0 0.0
    %338 = vmatpush1.msra.mxu0 0.0
    %339 = vmatprep.subr.mxu0 0.0
    %340 = vmatpush1.msra.mxu0 0.0
    %341 = vmatprep.subr.mxu0 0.0
    %342 = vmatpush1.msra.mxu0 0.0
    %343 = vmatprep.subr.mxu0 0.0
    %344 = vmatpush1.msra.mxu0 0.0
    %345 = vmatprep.subr.mxu0 0.0
    %346 = vmatpush1.msra.mxu0 0.0
    %347 = vmatprep.subr.mxu0 0.0
    %348 = vmatpush1.msra.mxu0 0.0
    %349 = vmatprep.subr.mxu0 0.0
    %350 = vmatpush1.msra.mxu0 0.0
    %351 = vmatprep.subr.mxu0 0.0
    %352 = vmatpush1.msra.mxu0 0.0
    %353 = vmatprep.subr.mxu0 0.0
    %354 = vmatpush1.msra.mxu0 0.0
    %355 = vmatprep.subr.mxu0 0.0
    %356 = vmatpush1.msra.mxu0 0.0
    %357 = vmatprep.subr.mxu0 0.0
    %358 = vmatpush1.msra.mxu0 0.0
    %359 = vmatprep.subr.mxu0 0.0
    %360 = vmatpush1.msra.mxu0 0.0
    %361 = vmatprep.subr.mxu0 0.0
    %362 = vmatpush1.msra.mxu0 0.0
    %363 = vmatprep.subr.mxu0 0.0
    %364 = vmatpush1.msra.mxu0 0.0
    %365 = vmatprep.subr.mxu0 0.0
    %366 = vmatpush1.msra.mxu0 0.0
    %367 = vmatprep.subr.mxu0 0.0
    %368 = vmatpush1.msra.mxu0 0.0
    %369 = vmatprep.subr.mxu0 0.0
    %370 = vmatpush1.msra.mxu0 0.0
    %371 = vmatprep.subr.mxu0 0.0
    %372 = vmatpush1.msra.mxu0 0.0
    %373 = vmatprep.subr.mxu0 0.0
    %374 = vmatpush1.msra.mxu0 0.0
    %375 = vmatprep.subr.mxu0 0.0
    %376 = vmatpush1.msra.mxu0 0.0
    %377 = vmatprep.subr.mxu0 0.0
    %378 = vmatpush1.msra.mxu0 0.0
    %379 = vmatprep.subr.mxu0 0.0
    %380 = vmatpush1.msra.mxu0 0.0
    %381 = vmatprep.subr.mxu0 0.0
    %382 = vmatpush1.msra.mxu0 0.0
    %383 = vmatprep.subr.mxu0 0.0
    %384 = vmatpush1.msra.mxu0 0.0
    %385 = vmatprep.subr.mxu0 0.0
    %386 = vmatpush1.msra.mxu0 0.0
    %387 = vmatprep.subr.mxu0 0.0
    %388 = vmatpush1.msra.mxu0 0.0
    %389 = vmatprep.subr.mxu0 0.0
    %390 = vmatpush1.msra.mxu0 0.0
    %391 = vmatprep.mubr.f32.mxu0 0.0
    %392 = vmatmul.mubr.f32.gmra.mrb[0].mxu0 %v325
    %v393 = vpop.f32.mrb[0].mxu0
    %v394 = vadd.f32 0.0, %v393
    %v395 = vpop.f32.mrb[0].mxu0
    %396 = vdwg.mxu0
    %v398 = vrot.slane %v394, 5
    %v399 = vrot.slane %v394, 6
    %v402 = vadd.f32 %v52, %v398
    %v403 = vadd.f32 %v53, %v399
    %v404 = vtanh.pop %v402
    %v405 = vtanh.pop %v403
    %vm406 = vcmask 257027
    %407 = vst.msk [vmem:[#allocation2] sm:$0x8] %vm406, %v404
    %408 = vst.msk [vmem:[#allocation2 + $0x8] sm:$0x8] %vm406, %v405
    %v411 = vrot.slane %v404, 3
    %v412 = vrot.slane %v405, 2
    %v413 = vsel %vm147, %v412, %v411
    %v414 = vsel %vm59, %v413, 0
    %416 = vmatprep.subr.mxu0 0.0
    %417 = vmatpush1.msra.mxu0 %v54
    %418 = vmatprep.subr.mxu0 0.0
    %419 = vmatpush1.msra.mxu0 %v55
    %420 = vmatprep.subr.mxu0 0.0
    %421 = vmatpush1.msra.mxu0 %v56
    %422 = vmatprep.subr.mxu0 0.0
    %423 = vmatpush1.msra.mxu0 %v57
    %424 = vmatprep.subr.mxu0 0.0
    %425 = vmatpush1.msra.mxu0 0.0
    %426 = vmatprep.subr.mxu0 0.0
    %427 = vmatpush1.msra.mxu0 0.0
    %428 = vmatprep.subr.mxu0 0.0
    %429 = vmatpush1.msra.mxu0 0.0
    %430 = vmatprep.subr.mxu0 0.0
    %431 = vmatpush1.msra.mxu0 0.0
    %432 = vmatprep.subr.mxu0 0.0
    %433 = vmatpush1.msra.mxu0 0.0
    %434 = vmatprep.subr.mxu0 0.0
    %435 = vmatpush1.msra.mxu0 0.0
    %436 = vmatprep.subr.mxu0 0.0
    %437 = vmatpush1.msra.mxu0 0.0
    %438 = vmatprep.subr.mxu0 0.0
    %439 = vmatpush1.msra.mxu0 0.0
    %440 = vmatprep.subr.mxu0 0.0
    %441 = vmatpush1.msra.mxu0 0.0
    %442 = vmatprep.subr.mxu0 0.0
    %443 = vmatpush1.msra.mxu0 0.0
    %444 = vmatprep.subr.mxu0 0.0
    %445 = vmatpush1.msra.mxu0 0.0
    %446 = vmatprep.subr.mxu0 0.0
    %447 = vmatpush1.msra.mxu0 0.0
    %448 = vmatprep.subr.mxu0 0.0
    %449 = vmatpush1.msra.mxu0 0.0
    %450 = vmatprep.subr.mxu0 0.0
    %451 = vmatpush1.msra.mxu0 0.0
    %452 = vmatprep.subr.mxu0 0.0
    %453 = vmatpush1.msra.mxu0 0.0
    %454 = vmatprep.subr.mxu0 0.0
    %455 = vmatpush1.msra.mxu0 0.0
    %456 = vmatprep.subr.mxu0 0.0
    %457 = vmatpush1.msra.mxu0 0.0
    %458 = vmatprep.subr.mxu0 0.0
    %459 = vmatpush1.msra.mxu0 0.0
    %460 = vmatprep.subr.mxu0 0.0
    %461 = vmatpush1.msra.mxu0 0.0
    %462 = vmatprep.subr.mxu0 0.0
    %463 = vmatpush1.msra.mxu0 0.0
    %464 = vmatprep.subr.mxu0 0.0
    %465 = vmatpush1.msra.mxu0 0.0
    %466 = vmatprep.subr.mxu0 0.0
    %467 = vmatpush1.msra.mxu0 0.0
    %468 = vmatprep.subr.mxu0 0.0
    %469 = vmatpush1.msra.mxu0 0.0
    %470 = vmatprep.subr.mxu0 0.0
    %471 = vmatpush1.msra.mxu0 0.0
    %472 = vmatprep.subr.mxu0 0.0
    %473 = vmatpush1.msra.mxu0 0.0
    %474 = vmatprep.subr.mxu0 0.0
    %475 = vmatpush1.msra.mxu0 0.0
    %476 = vmatprep.subr.mxu0 0.0
    %477 = vmatpush1.msra.mxu0 0.0
    %478 = vmatprep.subr.mxu0 0.0
    %479 = vmatpush1.msra.mxu0 0.0
    %480 = vmatprep.mubr.f32.mxu0 0.0
    %481 = vmatmul.mubr.f32.gmra.mrb[0].mxu0 %v414
    %v482 = vpop.f32.mrb[0].mxu0
    %v483 = vadd.f32 0.0, %v482
    %v484 = vpop.f32.mrb[0].mxu0
    %485 = vdwg.mxu0
    %v487 = vrot.slane %v483, 4
    %v488 = vrot.slane %v483, 5
    %v491 = vadd.f32 %v52, %v487
    %v492 = vadd.f32 %v53, %v488
    %v493 = vtanh.pop %v491
    %v494 = vtanh.pop %v492
    %vm495 = vcmask 258052
    %496 = vst.msk [vmem:[#allocation2] sm:$0x10] %vm495, %v493
    %497 = vst.msk [vmem:[#allocation2 + $0x8] sm:$0x10] %vm495, %v494
    %v500 = vrot.slane %v493, 4
    %v501 = vrot.slane %v494, 3
    %v502 = vsel %vm147, %v501, %v500
    %v503 = vsel %vm59, %v502, 0
    %505 = vmatprep.subr.mxu0 0.0
    %506 = vmatpush1.msra.mxu0 %v54
    %507 = vmatprep.subr.mxu0 0.0
    %508 = vmatpush1.msra.mxu0 %v55
    %509 = vmatprep.subr.mxu0 0.0
    %510 = vmatpush1.msra.mxu0 %v56
    %511 = vmatprep.subr.mxu0 0.0
    %512 = vmatpush1.msra.mxu0 %v57
    %513 = vmatprep.subr.mxu0 0.0
    %514 = vmatpush1.msra.mxu0 0.0
    %515 = vmatprep.subr.mxu0 0.0
    %516 = vmatpush1.msra.mxu0 0.0
    %517 = vmatprep.subr.mxu0 0.0
    %518 = vmatpush1.msra.mxu0 0.0
    %519 = vmatprep.subr.mxu0 0.0
    %520 = vmatpush1.msra.mxu0 0.0
    %521 = vmatprep.subr.mxu0 0.0
    %522 = vmatpush1.msra.mxu0 0.0
    %523 = vmatprep.subr.mxu0 0.0
    %524 = vmatpush1.msra.mxu0 0.0
    %525 = vmatprep.subr.mxu0 0.0
    %526 = vmatpush1.msra.mxu0 0.0
    %527 = vmatprep.subr.mxu0 0.0
    %528 = vmatpush1.msra.mxu0 0.0
    %529 = vmatprep.subr.mxu0 0.0
    %530 = vmatpush1.msra.mxu0 0.0
    %531 = vmatprep.subr.mxu0 0.0
    %532 = vmatpush1.msra.mxu0 0.0
    %533 = vmatprep.subr.mxu0 0.0
    %534 = vmatpush1.msra.mxu0 0.0
    %535 = vmatprep.subr.mxu0 0.0
    %536 = vmatpush1.msra.mxu0 0.0
    %537 = vmatprep.subr.mxu0 0.0
    %538 = vmatpush1.msra.mxu0 0.0
    %539 = vmatprep.subr.mxu0 0.0
    %540 = vmatpush1.msra.mxu0 0.0
    %541 = vmatprep.subr.mxu0 0.0
    %542 = vmatpush1.msra.mxu0 0.0
    %543 = vmatprep.subr.mxu0 0.0
    %544 = vmatpush1.msra.mxu0 0.0
    %545 = vmatprep.subr.mxu0 0.0
    %546 = vmatpush1.msra.mxu0 0.0
    %547 = vmatprep.subr.mxu0 0.0
    %548 = vmatpush1.msra.mxu0 0.0
    %549 = vmatprep.subr.mxu0 0.0
    %550 = vmatpush1.msra.mxu0 0.0
    %551 = vmatprep.subr.mxu0 0.0
    %552 = vmatpush1.msra.mxu0 0.0
    %553 = vmatprep.subr.mxu0 0.0
    %554 = vmatpush1.msra.mxu0 0.0
    %555 = vmatprep.subr.mxu0 0.0
    %556 = vmatpush1.msra.mxu0 0.0
    %557 = vmatprep.subr.mxu0 0.0
    %558 = vmatpush1.msra.mxu0 0.0
    %559 = vmatprep.subr.mxu0 0.0
    %560 = vmatpush1.msra.mxu0 0.0
    %561 = vmatprep.subr.mxu0 0.0
    %562 = vmatpush1.msra.mxu0 0.0
    %563 = vmatprep.subr.mxu0 0.0
    %564 = vmatpush1.msra.mxu0 0.0
    %565 = vmatprep.subr.mxu0 0.0
    %566 = vmatpush1.msra.mxu0 0.0
    %567 = vmatprep.subr.mxu0 0.0
    %568 = vmatpush1.msra.mxu0 0.0
    %569 = vmatprep.mubr.f32.mxu0 0.0
    %570 = vmatmul.mubr.f32.gmra.mrb[0].mxu0 %v503
    %v571 = vpop.f32.mrb[0].mxu0
    %v572 = vadd.f32 0.0, %v571
    %v573 = vpop.f32.mrb[0].mxu0
    %574 = vdwg.mxu0
    %v576 = vrot.slane %v572, 3
    %v577 = vrot.slane %v572, 4
    %v580 = vadd.f32 %v52, %v576
    %v581 = vadd.f32 %v53, %v577
    %v582 = vtanh.pop %v580
    %v583 = vtanh.pop %v581
    %vm584 = vcmask 259077
    %585 = vst.msk [vmem:[#allocation2] sm:$0x20] %vm584, %v582
    %586 = vst.msk [vmem:[#allocation2 + $0x8] sm:$0x20] %vm584, %v583
    %v589 = vrot.slane %v582, 5
    %v590 = vrot.slane %v583, 4
    %v591 = vsel %vm147, %v590, %v589
    %v592 = vsel %vm59, %v591, 0
    %594 = vmatprep.subr.mxu0 0.0
    %595 = vmatpush1.msra.mxu0 %v54
    %596 = vmatprep.subr.mxu0 0.0
    %597 = vmatpush1.msra.mxu0 %v55
    %598 = vmatprep.subr.mxu0 0.0
    %599 = vmatpush1.msra.mxu0 %v56
    %600 = vmatprep.subr.mxu0 0.0
    %601 = vmatpush1.msra.mxu0 %v57
    %602 = vmatprep.subr.mxu0 0.0
    %603 = vmatpush1.msra.mxu0 0.0
    %604 = vmatprep.subr.mxu0 0.0
    %605 = vmatpush1.msra.mxu0 0.0
    %606 = vmatprep.subr.mxu0 0.0
    %607 = vmatpush1.msra.mxu0 0.0
    %608 = vmatprep.subr.mxu0 0.0
    %609 = vmatpush1.msra.mxu0 0.0
    %610 = vmatprep.subr.mxu0 0.0
    %611 = vmatpush1.msra.mxu0 0.0
    %612 = vmatprep.subr.mxu0 0.0
    %613 = vmatpush1.msra.mxu0 0.0
    %614 = vmatprep.subr.mxu0 0.0
    %615 = vmatpush1.msra.mxu0 0.0
    %616 = vmatprep.subr.mxu0 0.0
    %617 = vmatpush1.msra.mxu0 0.0
    %618 = vmatprep.subr.mxu0 0.0
    %619 = vmatpush1.msra.mxu0 0.0
    %620 = vmatprep.subr.mxu0 0.0
    %621 = vmatpush1.msra.mxu0 0.0
    %622 = vmatprep.subr.mxu0 0.0
    %623 = vmatpush1.msra.mxu0 0.0
    %624 = vmatprep.subr.mxu0 0.0
    %625 = vmatpush1.msra.mxu0 0.0
    %626 = vmatprep.subr.mxu0 0.0
    %627 = vmatpush1.msra.mxu0 0.0
    %628 = vmatprep.subr.mxu0 0.0
    %629 = vmatpush1.msra.mxu0 0.0
    %630 = vmatprep.subr.mxu0 0.0
    %631 = vmatpush1.msra.mxu0 0.0
    %632 = vmatprep.subr.mxu0 0.0
    %633 = vmatpush1.msra.mxu0 0.0
    %634 = vmatprep.subr.mxu0 0.0
    %635 = vmatpush1.msra.mxu0 0.0
    %636 = vmatprep.subr.mxu0 0.0
    %637 = vmatpush1.msra.mxu0 0.0
    %638 = vmatprep.subr.mxu0 0.0
    %639 = vmatpush1.msra.mxu0 0.0
    %640 = vmatprep.subr.mxu0 0.0
    %641 = vmatpush1.msra.mxu0 0.0
    %642 = vmatprep.subr.mxu0 0.0
    %643 = vmatpush1.msra.mxu0 0.0
    %644 = vmatprep.subr.mxu0 0.0
    %645 = vmatpush1.msra.mxu0 0.0
    %646 = vmatprep.subr.mxu0 0.0
    %647 = vmatpush1.msra.mxu0 0.0
    %648 = vmatprep.subr.mxu0 0.0
    %649 = vmatpush1.msra.mxu0 0.0
    %650 = vmatprep.subr.mxu0 0.0
    %651 = vmatpush1.msra.mxu0 0.0
    %652 = vmatprep.subr.mxu0 0.0
    %653 = vmatpush1.msra.mxu0 0.0
    %654 = vmatprep.subr.mxu0 0.0
    %655 = vmatpush1.msra.mxu0 0.0
    %656 = vmatprep.subr.mxu0 0.0
    %657 = vmatpush1.msra.mxu0 0.0
    %658 = vmatprep.mubr.f32.mxu0 0.0
    %659 = vmatmul.mubr.f32.gmra.mrb[0].mxu0 %v592
    %v660 = vpop.f32.mrb[0].mxu0
    %v661 = vadd.f32 0.0, %v660
    %v662 = vpop.f32.mrb[0].mxu0
    %663 = vdwg.mxu0
    %v665 = vrot.slane %v661, 2
    %v666 = vrot.slane %v661, 3
    %v669 = vadd.f32 %v52, %v665
    %v670 = vadd.f32 %v53, %v666
    %v671 = vtanh.pop %v669
    %v672 = vtanh.pop %v670
    %vm673 = vcmask 260102
    %674 = vst.msk [vmem:[#allocation2] sm:$0x40] %vm673, %v671
    %675 = vst.msk [vmem:[#allocation2 + $0x8] sm:$0x40] %vm673, %v672
    %v678 = vrot.slane %v671, 6
    %v679 = vrot.slane %v672, 5
    %v680 = vsel %vm147, %v679, %v678
    %v681 = vsel %vm59, %v680, 0
    %683 = vmatprep.subr.mxu0 0.0
    %684 = vmatpush1.msra.mxu0 %v54
    %685 = vmatprep.subr.mxu0 0.0
    %686 = vmatpush1.msra.mxu0 %v55
    %687 = vmatprep.subr.mxu0 0.0
    %688 = vmatpush1.msra.mxu0 %v56
    %689 = vmatprep.subr.mxu0 0.0
    %690 = vmatpush1.msra.mxu0 %v57
    %691 = vmatprep.subr.mxu0 0.0
    %692 = vmatpush1.msra.mxu0 0.0
    %693 = vmatprep.subr.mxu0 0.0
    %694 = vmatpush1.msra.mxu0 0.0
    %695 = vmatprep.subr.mxu0 0.0
    %696 = vmatpush1.msra.mxu0 0.0
    %697 = vmatprep.subr.mxu0 0.0
    %698 = vmatpush1.msra.mxu0 0.0
    %699 = vmatprep.subr.mxu0 0.0
    %700 = vmatpush1.msra.mxu0 0.0
    %701 = vmatprep.subr.mxu0 0.0
    %702 = vmatpush1.msra.mxu0 0.0
    %703 = vmatprep.subr.mxu0 0.0
    %704 = vmatpush1.msra.mxu0 0.0
    %705 = vmatprep.subr.mxu0 0.0
    %706 = vmatpush1.msra.mxu0 0.0
    %707 = vmatprep.subr.mxu0 0.0
    %708 = vmatpush1.msra.mxu0 0.0
    %709 = vmatprep.subr.mxu0 0.0
    %710 = vmatpush1.msra.mxu0 0.0
    %711 = vmatprep.subr.mxu0 0.0
    %712 = vmatpush1.msra.mxu0 0.0
    %713 = vmatprep.subr.mxu0 0.0
    %714 = vmatpush1.msra.mxu0 0.0
    %715 = vmatprep.subr.mxu0 0.0
    %716 = vmatpush1.msra.mxu0 0.0
    %717 = vmatprep.subr.mxu0 0.0
    %718 = vmatpush1.msra.mxu0 0.0
    %719 = vmatprep.subr.mxu0 0.0
    %720 = vmatpush1.msra.mxu0 0.0
    %721 = vmatprep.subr.mxu0 0.0
    %722 = vmatpush1.msra.mxu0 0.0
    %723 = vmatprep.subr.mxu0 0.0
    %724 = vmatpush1.msra.mxu0 0.0
    %725 = vmatprep.subr.mxu0 0.0
    %726 = vmatpush1.msra.mxu0 0.0
    %727 = vmatprep.subr.mxu0 0.0
    %728 = vmatpush1.msra.mxu0 0.0
    %729 = vmatprep.subr.mxu0 0.0
    %730 = vmatpush1.msra.mxu0 0.0
    %731 = vmatprep.subr.mxu0 0.0
    %732 = vmatpush1.msra.mxu0 0.0
    %733 = vmatprep.subr.mxu0 0.0
    %734 = vmatpush1.msra.mxu0 0.0
    %735 = vmatprep.subr.mxu0 0.0
    %736 = vmatpush1.msra.mxu0 0.0
    %737 = vmatprep.subr.mxu0 0.0
    %738 = vmatpush1.msra.mxu0 0.0
    %739 = vmatprep.subr.mxu0 0.0
    %740 = vmatpush1.msra.mxu0 0.0
    %741 = vmatprep.subr.mxu0 0.0
    %742 = vmatpush1.msra.mxu0 0.0
    %743 = vmatprep.subr.mxu0 0.0
    %744 = vmatpush1.msra.mxu0 0.0
    %745 = vmatprep.subr.mxu0 0.0
    %746 = vmatpush1.msra.mxu0 0.0
    %747 = vmatprep.mubr.f32.mxu0 0.0
    %748 = vmatmul.mubr.f32.gmra.mrb[0].mxu0 %v681
    %v749 = vpop.f32.mrb[0].mxu0
    %v750 = vadd.f32 0.0, %v749
    %v751 = vpop.f32.mrb[0].mxu0
    %752 = vdwg.mxu0
    %v754 = vrot.slane %v750, 1
    %v755 = vrot.slane %v750, 2
    %v758 = vadd.f32 %v52, %v754
    %v759 = vadd.f32 %v53, %v755
    %v760 = vtanh.pop %v758
    %v761 = vtanh.pop %v759
    %vm762 = vcmask 261127
    %763 = vst.msk [vmem:[#allocation2] sm:$0x80] %vm762, %v760
    %764 = vst.msk [vmem:[#allocation2 + $0x8] sm:$0x80] %vm762, %v761
    %v767 = vrot.slane %v761, 7
    %770 = vst.msk [vmem:[#allocation4 - $0x7] sm:$0x80] %vm762, %v760
    %771 = vst.msk [vmem:[#allocation4 + $0x1] sm:$0x1] %vm141, %v767
    // Predicated region
    $region22: #{rnn_forward.1} parent=1 // pred_check
      _
    $region23: #{rnn_forward.1} parent=1 // pred_check_branch
      %773 = sbr.rel (0) target = $region25
    $region24: #{rnn_forward.1} parent=1 // pred_region
      %s775 = ssub.s32 256, 256
      %776 = vsyncadd [#allocation3], %s775
      %s777 = sshll.u32 [#allocation2], 4
      %s778 = int_to_ptr.vmem [resolvable:$true] %s777
      %783 = dma.vmem_to_hbm [thread:$0]  %s778, 256, %s5, [#allocation3], 128, 128, 8
    $region25: #{rnn_forward.1} parent=1 // pred_fallthru
      _
    // Predicated region
    $region26: #{rnn_forward.1} parent=1 // pred_check
      _
    $region27: #{rnn_forward.1} parent=1 // pred_check_branch
      %785 = sbr.rel (0) target = $region29
    $region28: #{rnn_forward.1} parent=1 // pred_region
      %s787 = ssub.s32 32, 32
      %788 = vsyncadd [#allocation5], %s787
      %s790 = sshll.u32 [#allocation4], 4
      %s791 = int_to_ptr.vmem [resolvable:$true] %s790
      %793 = dma.vmem_to_hbm [thread:$0]  %s791, 32, %s6, [#allocation5]
    $region29: #{rnn_forward.1} parent=1 // pred_fallthru
      _
    // Predicated region
    $region30: #{rnn_forward.1} parent=1 // pred_check
      _
    $region31: #{rnn_forward.1} parent=1 // pred_check_branch
      %795 = sbr.rel (0) target = $region33
    $region32: #{rnn_forward.1} parent=1 // pred_region
      %796 = dma.done [#allocation3], 256
    $region33: #{rnn_forward.1} parent=1 // pred_fallthru
      _
    // Predicated region
    $region34: #{rnn_forward.1} parent=1 // pred_check
      _
    $region35: #{rnn_forward.1} parent=1 // pred_check_branch
      %798 = sbr.rel (0) target = $region37
    $region36: #{rnn_forward.1} parent=1 // pred_region
      %799 = dma.done [#allocation5], 32
    $region37: #{rnn_forward.1} parent=1 // pred_fallthru
      _
    %800 = vsyncpa [#allocation3], 1
    %801 = vsyncpa [#allocation5], 1

</llo_original>
